<compile_context>
chip_gen: v7x
topology: tpu7x:2x2x1
jax: 0.10.0
libtpu: 0.0.40
codegen_flags: <defaults>
</compile_context>

<pallas_src>
import functools

import jax
import jax.numpy as jnp
from jax.experimental import pallas as pl
from jax.experimental.pallas import tpu as pltpu


# ---------------------------------------------------------------------------
# Stage 1: fused conv3x3 (im2col matmul) + BN(eval) + ReLU + conv1x1
# ---------------------------------------------------------------------------
def _conv_bn_relu_cls_kernel(patches_ref, w1_ref, scale_ref, shift_ref,
                             w2_ref, b2_ref, logits_ref):
    # patches_ref : (1, TS, K9P)    bf16  im2col rows of the 3x3 conv
    # w1_ref      : (K9P, C_MID)    bf16  conv weights (im2col-matched layout)
    # scale_ref   : (1, C_MID)      f32   folded BatchNorm scale
    # shift_ref   : (1, C_MID)      f32   folded BatchNorm shift
    # w2_ref      : (C_MID, N_CLS)  bf16  1x1 classification conv weights
    # b2_ref      : (1, N_CLS)      f32   1x1 conv bias
    # logits_ref  : (1, TS, N_CLS)  f32   pre-upsample logits
    acc = jnp.dot(patches_ref[0], w1_ref[...],
                  preferred_element_type=jnp.float32)            # (TS, C_MID)
    # BatchNorm (eval, running stats folded) + ReLU.
    y = jnp.maximum(acc * scale_ref[...] + shift_ref[...], 0.0)
    # Dropout2d(p=0.1) is identity in eval mode.
    logits_ref[0] = (jnp.dot(y.astype(jnp.bfloat16), w2_ref[...],
                             preferred_element_type=jnp.float32)
                     + b2_ref[...]).astype(logits_ref.dtype)


# ---------------------------------------------------------------------------
# Stage 2: separable bilinear upsample (align_corners=True), channel-major
# ---------------------------------------------------------------------------
def _upsample_kernel(lc_ref, rwT_ref, rh_ref, out_ref, lcw_ref, *, H, N_CLS):
    # lc_ref  : (1, N_CLS*H, W)     f32  channel-major logits for one image
    # rwT_ref : (W, OW)             f32  bilinear col-interp (lane-dense OW)
    # rh_ref  : (TOH, H)            f32  bilinear row-interp rows of this tile
    # out_ref : (1, N_CLS, TOH, OW) f32  NCHW output tile (lane-dense OW)
    # lcw_ref : (N_CLS*H, OW)       f32  VMEM scratch: W-upsampled logits
    t = pl.program_id(1)

    # W-direction upsample once per image; reused across all OH tiles.
    @pl.when(t == 0)
    def _():
        lcw_ref[...] = jnp.dot(lc_ref[0], rwT_ref[...],
                               preferred_element_type=jnp.float32)

    # H-direction upsample for this block of output rows, one class at a time:
    # every matmul is a clean 2-D MXU dot and every store is lane-dense.
    rh_t = rh_ref[...]                                           # (TOH, H)
    for c in range(N_CLS):                                       # static unroll
        out_ref[0, c] = jnp.dot(
            rh_t, lcw_ref[pl.ds(c * H, H), :],
            preferred_element_type=jnp.float32).astype(out_ref.dtype)


# ---------------------------------------------------------------------------
# Helpers
# ---------------------------------------------------------------------------
def _interp_matrix(out_size, in_size):
    """Dense align_corners=True bilinear interpolation matrix (out, in)."""
    if in_size == 1:
        return jnp.ones((out_size, 1), jnp.float32)
    pos = (jnp.arange(out_size, dtype=jnp.float32)
           * (in_size - 1) / max(out_size - 1, 1))
    lo = jnp.clip(jnp.floor(pos).astype(jnp.int32), 0, in_size - 2)
    frac = pos - lo.astype(jnp.float32)
    rows = jnp.arange(out_size)
    m = jnp.zeros((out_size, in_size), jnp.float32)
    m = m.at[rows, lo].add(1.0 - frac)
    m = m.at[rows, lo + 1].add(frac)
    return m


def _pick_row_tile(n, target):
    """Largest multiple-of-8 proper divisor of n that is <= target (else n)."""
    best = None
    for d in range(8, min(n, target) + 1, 8):
        if d < n and n % d == 0:
            best = d
    return best if best is not None else n


# ---------------------------------------------------------------------------
# Wrapper
# ---------------------------------------------------------------------------
def auxiliary_forward(x_nchw, params, *, height, width):
    """x_nchw: (N, C_in, H, W) f32. Returns (N, n_classes, height, width) f32."""
    N, C_IN, H, W = x_nchw.shape
    w1, gamma, beta, r_mean, r_var, w2, b2 = (
        params['w1'], params['gamma'], params['beta'],
        params['running_mean'], params['running_var'],
        params['w2'], params['b2'])
    C_MID = w1.shape[-1]
    N_CLS = w2.shape[-1]
    HW = H * W
    OH, OW = height, width

    # --- host-side layout plumbing: im2col so the conv is one MXU matmul ----
    x_nhwc = jnp.transpose(x_nchw, (0, 2, 3, 1))
    x_pad = jnp.pad(x_nhwc, ((0, 0), (1, 1), (1, 1), (0, 0)))
    taps = [x_pad[:, dy:dy + H, dx:dx + W, :]
            for dy in range(3) for dx in range(3)]
    patches = jnp.concatenate(taps, axis=-1).reshape(N, HW, 9 * C_IN)

    K9 = 9 * C_IN
    K9P = ((K9 + 127) // 128) * 128          # pad contraction dim to 128 lanes
    if K9P != K9:
        patches = jnp.pad(patches, ((0, 0), (0, 0), (0, K9P - K9)))
    patches = patches.astype(jnp.bfloat16)

    w1mat = w1.reshape(K9, C_MID)
    if K9P != K9:
        w1mat = jnp.pad(w1mat, ((0, K9P - K9), (0, 0)))
    w1mat = w1mat.astype(jnp.bfloat16)

    # Fold BatchNorm (eval) into per-channel scale/shift (applied in f32).
    eps = 1e-5
    inv_std = 1.0 / jnp.sqrt(r_var + eps)
    scale = (gamma * inv_std).reshape(1, C_MID).astype(jnp.float32)
    shift = (beta - r_mean * gamma * inv_std).reshape(1, C_MID).astype(jnp.float32)

    w2b = w2.astype(jnp.bfloat16)
    b2_2d = b2.reshape(1, N_CLS).astype(jnp.float32)

    vmem_limit = 48 * 1024 * 1024

    # --- stage 1: conv3x3 + BN + ReLU + 1x1 conv ----------------------------
    TS = _pick_row_tile(HW, target=512)
    S = HW // TS
    flops1 = N * (2 * HW * K9P * C_MID + 2 * HW * C_MID * N_CLS)
    bytes1 = (patches.size * 2 + w1mat.size * 2 + w2b.size * 2
              + (scale.size + shift.size + b2_2d.size) * 4
              + N * HW * N_CLS * 4)

    logits = pl.pallas_call(
        _conv_bn_relu_cls_kernel,
        out_shape=jax.ShapeDtypeStruct((N, HW, N_CLS), jnp.float32),
        grid_spec=pltpu.PrefetchScalarGridSpec(
            num_scalar_prefetch=0,
            grid=(N, S),
            in_specs=[
                pl.BlockSpec((1, TS, K9P), lambda n, s: (n, s, 0)),
                pl.BlockSpec((K9P, C_MID), lambda n, s: (0, 0)),
                pl.BlockSpec((1, C_MID), lambda n, s: (0, 0)),
                pl.BlockSpec((1, C_MID), lambda n, s: (0, 0)),
                pl.BlockSpec((C_MID, N_CLS), lambda n, s: (0, 0)),
                pl.BlockSpec((1, N_CLS), lambda n, s: (0, 0)),
            ],
            out_specs=pl.BlockSpec((1, TS, N_CLS), lambda n, s: (n, s, 0)),
        ),
        compiler_params=pltpu.CompilerParams(
            dimension_semantics=("parallel", "parallel"),
            vmem_limit_bytes=vmem_limit),
        cost_estimate=pl.CostEstimate(flops=flops1, transcendentals=0,
                                      bytes_accessed=bytes1),
    )(patches, w1mat, scale, shift, w2b, b2_2d)

    # --- tiny XLA transpose of the pre-upsample logits to channel-major -----
    # (N, H*W, N_CLS) -> (N, N_CLS*H, W): small tensor, cheap, and it lets the
    # upsample kernel use only lane-dense 2-D matmuls and NCHW stores.
    lc = jnp.transpose(logits.reshape(N, H, W, N_CLS), (0, 3, 1, 2))
    lc = lc.reshape(N, N_CLS * H, W)

    # --- stage 2: separable bilinear upsample (align_corners=True) ----------
    rh = _interp_matrix(OH, H)                    # (OH, H)
    rwT = jnp.transpose(_interp_matrix(OW, W))    # (W, OW): lane-dense in OW
    TOH = _pick_row_tile(OH, target=128)
    T = OH // TOH
    flops2 = N * (2 * N_CLS * H * W * OW + 2 * N_CLS * OH * H * OW)
    bytes2 = lc.size * 4 + (rh.size + rwT.size) * 4 + N * N_CLS * OH * OW * 4

    kern2 = functools.partial(_upsample_kernel, H=H, N_CLS=N_CLS)
    out = pl.pallas_call(
        kern2,
        out_shape=jax.ShapeDtypeStruct((N, N_CLS, OH, OW), jnp.float32),
        grid_spec=pltpu.PrefetchScalarGridSpec(
            num_scalar_prefetch=0,
            grid=(N, T),
            in_specs=[
                pl.BlockSpec((1, N_CLS * H, W), lambda n, t: (n, 0, 0)),
                pl.BlockSpec((W, OW), lambda n, t: (0, 0)),
                pl.BlockSpec((TOH, H), lambda n, t: (t, 0)),
            ],
            out_specs=pl.BlockSpec((1, N_CLS, TOH, OW),
                                   lambda n, t: (n, 0, t, 0)),
            scratch_shapes=[pltpu.VMEM((N_CLS * H, OW), jnp.float32)],
        ),
        compiler_params=pltpu.CompilerParams(
            dimension_semantics=("parallel", "arbitrary"),
            vmem_limit_bytes=vmem_limit),
        cost_estimate=pl.CostEstimate(flops=flops2, transcendentals=0,
                                      bytes_accessed=bytes2),
    )(lc, rwT, rh)

    return out  # already NCHW / channel-major: no output transpose


# ---------------------------------------------------------------------------
# Plain-JAX reference (same bf16 operand quantization, f32 accumulation)
# ---------------------------------------------------------------------------
def auxiliary_reference(x_nchw, params, *, height, width):
    w1, gamma, beta, r_mean, r_var, w2, b2 = (
        params['w1'], params['gamma'], params['beta'],
        params['running_mean'], params['running_var'],
        params['w2'], params['b2'])
    eps = 1e-5
    x_nhwc = jnp.transpose(x_nchw, (0, 2, 3, 1))
    y = jax.lax.conv_general_dilated(
        x_nhwc.astype(jnp.bfloat16), w1.astype(jnp.bfloat16),
        window_strides=(1, 1), padding=((1, 1), (1, 1)),
        dimension_numbers=('NHWC', 'HWIO', 'NHWC'),
        preferred_element_type=jnp.float32)
    y = (y - r_mean) / jnp.sqrt(r_var + eps) * gamma + beta
    y = jnp.maximum(y, 0.0)
    logits = jnp.einsum('nhwc,cf->nhwf', y.astype(jnp.bfloat16),
                        w2.astype(jnp.bfloat16),
                        preferred_element_type=jnp.float32) + b2
    rh = _interp_matrix(height, x_nchw.shape[2])
    rw = _interp_matrix(width, x_nchw.shape[3])
    up = jnp.einsum('ah,nhwc->nawc', rh, logits)
    up = jnp.einsum('bw,nawc->nabc', rw, up)
    return jnp.transpose(up, (0, 3, 1, 2))


# ---------------------------------------------------------------------------
if __name__ == "__main__":
    N, C_IN, H, W = 2, 4, 16, 16
    N_CLS = 8
    C_MID = 256               # fixed by the module definition
    HEIGHT, WIDTH = 32, 32    # F.interpolate target size

    key = jax.random.PRNGKey(0)
    k = jax.random.split(key, 8)

    params = {
        'w1': 0.1 * jax.random.normal(k[0], (3, 3, C_IN, C_MID), jnp.float32),  # HWIO
        'gamma': 1.0 + 0.1 * jax.random.normal(k[1], (C_MID,), jnp.float32),
        'beta': 0.1 * jax.random.normal(k[2], (C_MID,), jnp.float32),
        'running_mean': 0.05 * jax.random.normal(k[3], (C_MID,), jnp.float32),
        'running_var': 1.0 + 0.1 * jax.random.uniform(k[4], (C_MID,), jnp.float32),
        'w2': 0.1 * jax.random.normal(k[5], (C_MID, N_CLS), jnp.float32),
        'b2': 0.1 * jax.random.normal(k[6], (N_CLS,), jnp.float32),
    }
    x = jax.random.normal(k[7], (N, C_IN, H, W), jnp.float32)

    out = auxiliary_forward(x, params, height=HEIGHT, width=WIDTH)
    out = jax.block_until_ready(out)

    ref = auxiliary_reference(x, params, height=HEIGHT, width=WIDTH)
    assert out.shape == (N, N_CLS, HEIGHT, WIDTH), out.shape
    err = float(jnp.max(jnp.abs(out - ref)))
    assert err < 5e-3, err

    print("KERNEL_OK")
</pallas_src>

<mosaic_0001>
module attributes {stable_mosaic.version = 11 : i64} {
  func.func @_conv_bn_relu_cls_kernel(%arg0: i32, %arg1: i32, %arg2: memref<1x128x128xbf16, #tpu.memory_space<vmem>>, %arg3: memref<128x256xbf16, #tpu.memory_space<vmem>>, %arg4: memref<1x256xf32, #tpu.memory_space<vmem>>, %arg5: memref<1x256xf32, #tpu.memory_space<vmem>>, %arg6: memref<256x8xbf16, #tpu.memory_space<vmem>>, %arg7: memref<1x8xf32, #tpu.memory_space<vmem>>, %arg8: memref<1x128x8xf32, #tpu.memory_space<vmem>>) attributes {dimension_semantics = [#tpu.dimension_semantics<parallel>, #tpu.dimension_semantics<parallel>], iteration_bounds = array<i64: 2, 2>, scalar_prefetch = 0 : i64, scratch_operands = 0 : i64, tpu.core_type = #tpu.core_type<tc>, window_params = [{transform_indices = @transform_0, window_bounds = array<i64: 1, 128, 128>}, {pipeline_mode = #tpu.pipeline_mode<synchronous>, transform_indices = @transform_1, window_bounds = array<i64: 128, 256>}, {pipeline_mode = #tpu.pipeline_mode<synchronous>, transform_indices = @transform_2, window_bounds = array<i64: 1, 256>}, {pipeline_mode = #tpu.pipeline_mode<synchronous>, transform_indices = @transform_3, window_bounds = array<i64: 1, 256>}, {pipeline_mode = #tpu.pipeline_mode<synchronous>, transform_indices = @transform_4, window_bounds = array<i64: 256, 8>}, {pipeline_mode = #tpu.pipeline_mode<synchronous>, transform_indices = @transform_5, window_bounds = array<i64: 1, 8>}, {transform_indices = @transform_6, window_bounds = array<i64: 1, 128, 8>}]} {
    %c0 = arith.constant 0 : index
    %c0_0 = arith.constant 0 : index
    %c0_1 = arith.constant 0 : index
    %0 = vector.load %arg2[%c0, %c0_0, %c0_1] : memref<1x128x128xbf16, #tpu.memory_space<vmem>>, vector<1x128x128xbf16>
    %1 = vector.shape_cast %0 : vector<1x128x128xbf16> to vector<128x128xbf16>
    %c0_2 = arith.constant 0 : index
    %c0_3 = arith.constant 0 : index
    %2 = vector.load %arg3[%c0_2, %c0_3] : memref<128x256xbf16, #tpu.memory_space<vmem>>, vector<128x256xbf16>
    %cst = arith.constant dense<0.000000e+00> : vector<128x256xf32>
    %3 = tpu.matmul %1, %2, %cst {dimension_numbers = #tpu.dot_dimension_numbers<[1], [0], [0], [1], [0, 0, 1, 1], [], []>} : vector<128x128xbf16>, vector<128x256xbf16>, vector<128x256xf32> -> vector<128x256xf32>
    %c0_4 = arith.constant 0 : index
    %c0_5 = arith.constant 0 : index
    %4 = vector.load %arg4[%c0_4, %c0_5] : memref<1x256xf32, #tpu.memory_space<vmem>>, vector<1x256xf32>
    %5 = vector.broadcast %4 : vector<1x256xf32> to vector<128x256xf32>
    %6 = arith.mulf %3, %5 : vector<128x256xf32>
    %c0_6 = arith.constant 0 : index
    %c0_7 = arith.constant 0 : index
    %7 = vector.load %arg5[%c0_6, %c0_7] : memref<1x256xf32, #tpu.memory_space<vmem>>, vector<1x256xf32>
    %8 = vector.broadcast %7 : vector<1x256xf32> to vector<128x256xf32>
    %9 = arith.addf %6, %8 : vector<128x256xf32>
    %cst_8 = arith.constant 0.000000e+00 : f32
    %10 = vector.broadcast %cst_8 : f32 to vector<128x256xf32>
    %11 = arith.maximumf %9, %10 : vector<128x256xf32>
    %12 = arith.truncf %11 : vector<128x256xf32> to vector<128x256xbf16>
    %c0_9 = arith.constant 0 : index
    %c0_10 = arith.constant 0 : index
    %13 = vector.load %arg6[%c0_9, %c0_10] : memref<256x8xbf16, #tpu.memory_space<vmem>>, vector<256x8xbf16>
    %cst_11 = arith.constant dense<0.000000e+00> : vector<128x8xf32>
    %14 = tpu.matmul %12, %13, %cst_11 {dimension_numbers = #tpu.dot_dimension_numbers<[1], [0], [0], [1], [0, 0, 1, 1], [], []>} : vector<128x256xbf16>, vector<256x8xbf16>, vector<128x8xf32> -> vector<128x8xf32>
    %c0_12 = arith.constant 0 : index
    %c0_13 = arith.constant 0 : index
    %15 = vector.load %arg7[%c0_12, %c0_13] : memref<1x8xf32, #tpu.memory_space<vmem>>, vector<1x8xf32>
    %16 = vector.broadcast %15 : vector<1x8xf32> to vector<128x8xf32>
    %17 = arith.addf %14, %16 : vector<128x8xf32>
    %c0_14 = arith.constant 0 : index
    %c0_15 = arith.constant 0 : index
    %c0_16 = arith.constant 0 : index
    %18 = vector.load %arg8[%c0_14, %c0_15, %c0_16] : memref<1x128x8xf32, #tpu.memory_space<vmem>>, vector<1x128x8xf32>
    %19 = vector.shape_cast %18 : vector<1x128x8xf32> to vector<128x8xf32>
    %20 = vector.shape_cast %17 : vector<128x8xf32> to vector<1x128x8xf32>
    tpu.vector_store %arg8[%c0_14, %c0_15, %c0_16], %20 {strides = array<i32>} : memref<1x128x8xf32, #tpu.memory_space<vmem>>, vector<1x128x8xf32>,
    return
  }
  func.func @transform_0(%arg0: i32, %arg1: i32) -> (i32, i32, i32) {
    %c0_i32 = arith.constant 0 : i32
    %c0_i32_0 = arith.constant 0 : i32
    return %arg0, %arg1, %c0_i32 : i32, i32, i32
  }
  func.func @transform_1(%arg0: i32, %arg1: i32) -> (i32, i32) {
    %c0_i32 = arith.constant 0 : i32
    %c0_i32_0 = arith.constant 0 : i32
    %c0_i32_1 = arith.constant 0 : i32
    return %c0_i32, %c0_i32_0 : i32, i32
  }
  func.func @transform_2(%arg0: i32, %arg1: i32) -> (i32, i32) {
    %c0_i32 = arith.constant 0 : i32
    %c0_i32_0 = arith.constant 0 : i32
    %c0_i32_1 = arith.constant 0 : i32
    return %c0_i32, %c0_i32_0 : i32, i32
  }
  func.func @transform_3(%arg0: i32, %arg1: i32) -> (i32, i32) {
    %c0_i32 = arith.constant 0 : i32
    %c0_i32_0 = arith.constant 0 : i32
    %c0_i32_1 = arith.constant 0 : i32
    return %c0_i32, %c0_i32_0 : i32, i32
  }
  func.func @transform_4(%arg0: i32, %arg1: i32) -> (i32, i32) {
    %c0_i32 = arith.constant 0 : i32
    %c0_i32_0 = arith.constant 0 : i32
    %c0_i32_1 = arith.constant 0 : i32
    return %c0_i32, %c0_i32_0 : i32, i32
  }
  func.func @transform_5(%arg0: i32, %arg1: i32) -> (i32, i32) {
    %c0_i32 = arith.constant 0 : i32
    %c0_i32_0 = arith.constant 0 : i32
    %c0_i32_1 = arith.constant 0 : i32
    return %c0_i32, %c0_i32_0 : i32, i32
  }
  func.func @transform_6(%arg0: i32, %arg1: i32) -> (i32, i32, i32) {
    %c0_i32 = arith.constant 0 : i32
    %c0_i32_0 = arith.constant 0 : i32
    return %arg0, %arg1, %c0_i32 : i32, i32, i32
  }
}

</mosaic_0001>

<llo_original>
// kernel: tpu_custom_call.1
$region0: #{tpu_custom_call.1}
  #allocation0 [shape = 'u32[]', space=smem, size = 0x4, offset = 0x4, fixed_abs, tag = 'smem constant byte address 0x4 - core index']
  #allocation1 [shape = 'u32[144,128]{1,0:T(1,128)}', space=vmem, size = 0x12000, scoped, tag = 'internal scratch']
  %s0 = inlined_call_operand.hbm [shape: bf16[2,256,128], index: 0, kind: input, shape index: {}]
  %s1 = inlined_call_operand.vmem [shape: bf16[128,256], index: 1, kind: input, shape index: {}]
  %s2 = inlined_call_operand.vmem [shape: f32[1,256], index: 2, kind: input, shape index: {}]
  %s3 = inlined_call_operand.vmem [shape: f32[1,256], index: 3, kind: input, shape index: {}]
  %s4 = inlined_call_operand.vmem [shape: bf16[256,8], index: 4, kind: input, shape index: {}]
  %s5 = inlined_call_operand.vmem [shape: f32[1,8], index: 5, kind: input, shape index: {}]
  %s6 = inlined_call_operand.vmem [shape: f32[2,256,8], index: 6, kind: output, shape index: {}]
  %s7 = sld [smem:[#allocation0]]
  $region61: #{tpu_custom_call.1} parent=0
    _
  %s9 = ssub.s32 1, %s7
  %s10 = scalar_select 0, %s9, %s7
  $region1: #{tpu_custom_call.1} parent=0
    #allocation2 [shape = 'u8[65536]{0}', space=vmem, size = 0x10000, scoped, tag = 'input window, operand 0']
    #allocation3 [shape = 's32[2]{0}', space=sflag, size = 0x8, scoped, tag = 'scoped memory for tpu_custom_call.1']
    %11 = vsyncpa [#allocation3], 0
    %s12 = scalar_lea.sflag [#allocation3], 1
    %13 = vsyncpa %s12, 0
    loop: start=0, step=1, limit=6
    $region2: #{tpu_custom_call.1} parent=1 // loop_pre_header
      _
    $region3: #{tpu_custom_call.1} parent=1 // loop_header
      %s15 = sphi 0, %s19
      %p16 = scmp.ge.s32.totalorder %s15, 6
      %s22 = sphi 0, %s34
      %s23 = sphi 0, %s30
      %s24 = sphi 0, %s22
      %s25 = sphi 0, %s23
      %s26 = sphi 0, %s24
      %s27 = sphi 0, %s25
      %s39 = sphi 0, %s41
      %s42 = sphi 0, %s39
      %s43 = sphi 0, %s42
      %s59 = sphi 0, %s43
      %s63 = sphi 0, %s63
      %s65 = sphi 0, %s63
      %s66 = sphi 0, %s65
      %s80 = sphi 0, %s66
      %s84 = sphi 0, %s84
      %s86 = sphi 0, %s84
      %s87 = sphi 0, %s86
      %s101 = sphi 0, %s87
      %s105 = sphi 0, %s105
      %s107 = sphi 0, %s105
      %s108 = sphi 0, %s107
      %s122 = sphi 0, %s108
      %s126 = sphi 0, %s126
      %s128 = sphi 0, %s126
      %s129 = sphi 0, %s128
      %s143 = sphi 0, %s129
      %s147 = sphi 0, %s147
      %s149 = sphi 0, %s147
      %s150 = sphi 0, %s149
      %s164 = sphi 0, %s150
      %s172 = sphi 0, %s174
      %s175 = sphi 0, %s172
      %s176 = sphi 0, %s175
      %s192 = sphi 0, %s176
    $region4: #{tpu_custom_call.1} parent=1 // loop_header_branch
      %18 = sbr.rel (%p16) target = $region8
    $region5: #{tpu_custom_call.1} parent=1 // loop_body
      %s20 = ssub.s32 %s15, 1
      %s21 = ssub.s32 %s15, 2
      %s28 = sadd.s32 1, %s23
      %p29 = scmp.ge.s32.totalorder %s28, 2
      %s30 = scalar_select %p29, 0, %s28
      %s31 = sadd.s32 1, %s22
      %s32 = scalar_select %p29, %s31, %s22
      %p33 = scmp.ge.s32.totalorder %s32, 2
      %s34 = scalar_select %p33, 0, %s32
      %s35 = ssub.s32 %s22, %s34
      %s36 = ssub.s32 %s23, %s30
      %s37 = sor.u32 %s35, %s36
      %p38 = scmp.eq.s32.totalorder %s37, 0
      %s40 = sadd.s32 %s39, 1
      %s41 = scalar_select %p38, %s39, %s40
      %p44 = pneg %p38
      %p45 = scmp.eq.s32.totalorder %s15, 3
      %p46 = por %p44, %p45
      %p47 = scmp.ne.s32.totalorder %s39, %s42
      %p48 = scmp.eq.s32.totalorder %s15, 0
      %p49 = por %p47, %p48
      %p50 = scmp.ne.s32.totalorder %s39, %s42
      %p51 = scmp.eq.s32.totalorder %s20, 3
      %p52 = por %p50, %p51
      %p53 = scmp.ne.s32.totalorder %s42, %s43
      %p54 = scmp.eq.s32.totalorder %s20, 0
      %p55 = por %p53, %p54
      %p56 = scmp.ne.s32.totalorder %s42, %s43
      %p57 = scmp.eq.s32.totalorder %s21, 3
      %p58 = por %p56, %p57
      %p60 = scmp.ne.s32.totalorder %s43, %s59
      %p61 = scmp.eq.s32.totalorder %s21, 0
      %p62 = por %p60, %p61
      %s64 = sadd.s32 %s63, 1
      %p67 = scmp.eq.s32.totalorder %s15, 3
      %p68 = scmp.ne.s32.totalorder %s63, %s65
      %p69 = scmp.eq.s32.totalorder %s15, 0
      %p70 = por %p68, %p69
      %p71 = scmp.ne.s32.totalorder %s63, %s65
      %p72 = scmp.eq.s32.totalorder %s20, 3
      %p73 = por %p71, %p72
      %p74 = scmp.ne.s32.totalorder %s65, %s66
      %p75 = scmp.eq.s32.totalorder %s20, 0
      %p76 = por %p74, %p75
      %p77 = scmp.ne.s32.totalorder %s65, %s66
      %p78 = scmp.eq.s32.totalorder %s21, 3
      %p79 = por %p77, %p78
      %p81 = scmp.ne.s32.totalorder %s66, %s80
      %p82 = scmp.eq.s32.totalorder %s21, 0
      %p83 = por %p81, %p82
      %s85 = sadd.s32 %s84, 1
      %p88 = scmp.eq.s32.totalorder %s15, 3
      %p89 = scmp.ne.s32.totalorder %s84, %s86
      %p90 = scmp.eq.s32.totalorder %s15, 0
      %p91 = por %p89, %p90
      %p92 = scmp.ne.s32.totalorder %s84, %s86
      %p93 = scmp.eq.s32.totalorder %s20, 3
      %p94 = por %p92, %p93
      %p95 = scmp.ne.s32.totalorder %s86, %s87
      %p96 = scmp.eq.s32.totalorder %s20, 0
      %p97 = por %p95, %p96
      %p98 = scmp.ne.s32.totalorder %s86, %s87
      %p99 = scmp.eq.s32.totalorder %s21, 3
      %p100 = por %p98, %p99
      %p102 = scmp.ne.s32.totalorder %s87, %s101
      %p103 = scmp.eq.s32.totalorder %s21, 0
      %p104 = por %p102, %p103
      %s106 = sadd.s32 %s105, 1
      %p109 = scmp.eq.s32.totalorder %s15, 3
      %p110 = scmp.ne.s32.totalorder %s105, %s107
      %p111 = scmp.eq.s32.totalorder %s15, 0
      %p112 = por %p110, %p111
      %p113 = scmp.ne.s32.totalorder %s105, %s107
      %p114 = scmp.eq.s32.totalorder %s20, 3
      %p115 = por %p113, %p114
      %p116 = scmp.ne.s32.totalorder %s107, %s108
      %p117 = scmp.eq.s32.totalorder %s20, 0
      %p118 = por %p116, %p117
      %p119 = scmp.ne.s32.totalorder %s107, %s108
      %p120 = scmp.eq.s32.totalorder %s21, 3
      %p121 = por %p119, %p120
      %p123 = scmp.ne.s32.totalorder %s108, %s122
      %p124 = scmp.eq.s32.totalorder %s21, 0
      %p125 = por %p123, %p124
      %s127 = sadd.s32 %s126, 1
      %p130 = scmp.eq.s32.totalorder %s15, 3
      %p131 = scmp.ne.s32.totalorder %s126, %s128
      %p132 = scmp.eq.s32.totalorder %s15, 0
      %p133 = por %p131, %p132
      %p134 = scmp.ne.s32.totalorder %s126, %s128
      %p135 = scmp.eq.s32.totalorder %s20, 3
      %p136 = por %p134, %p135
      %p137 = scmp.ne.s32.totalorder %s128, %s129
      %p138 = scmp.eq.s32.totalorder %s20, 0
      %p139 = por %p137, %p138
      %p140 = scmp.ne.s32.totalorder %s128, %s129
      %p141 = scmp.eq.s32.totalorder %s21, 3
      %p142 = por %p140, %p141
      %p144 = scmp.ne.s32.totalorder %s129, %s143
      %p145 = scmp.eq.s32.totalorder %s21, 0
      %p146 = por %p144, %p145
      %s148 = sadd.s32 %s147, 1
      %p151 = scmp.eq.s32.totalorder %s15, 3
      %p152 = scmp.ne.s32.totalorder %s147, %s149
      %p153 = scmp.eq.s32.totalorder %s15, 0
      %p154 = por %p152, %p153
      %p155 = scmp.ne.s32.totalorder %s147, %s149
      %p156 = scmp.eq.s32.totalorder %s20, 3
      %p157 = por %p155, %p156
      %p158 = scmp.ne.s32.totalorder %s149, %s150
      %p159 = scmp.eq.s32.totalorder %s20, 0
      %p160 = por %p158, %p159
      %p161 = scmp.ne.s32.totalorder %s149, %s150
      %p162 = scmp.eq.s32.totalorder %s21, 3
      %p163 = por %p161, %p162
      %p165 = scmp.ne.s32.totalorder %s150, %s164
      %p166 = scmp.eq.s32.totalorder %s21, 0
      %p167 = por %p165, %p166
      %s168 = ssub.s32 %s22, %s34
      %s169 = ssub.s32 %s23, %s30
      %s170 = sor.u32 %s168, %s169
      %p171 = scmp.eq.s32.totalorder %s170, 0
      %s173 = sadd.s32 %s172, 1
      %s174 = scalar_select %p171, %s172, %s173
      %p177 = pneg %p171
      %p178 = scmp.eq.s32.totalorder %s15, 3
      %p179 = por %p177, %p178
      %p180 = scmp.ne.s32.totalorder %s172, %s175
      %p181 = scmp.eq.s32.totalorder %s15, 0
      %p182 = por %p180, %p181
      %p183 = scmp.ne.s32.totalorder %s172, %s175
      %p184 = scmp.eq.s32.totalorder %s20, 3
      %p185 = por %p183, %p184
      %p186 = scmp.ne.s32.totalorder %s175, %s176
      %p187 = scmp.eq.s32.totalorder %s20, 0
      %p188 = por %p186, %p187
      %p189 = scmp.ne.s32.totalorder %s175, %s176
      %p190 = scmp.eq.s32.totalorder %s21, 3
      %p191 = por %p189, %p190
      %p193 = scmp.ne.s32.totalorder %s176, %s192
      %p194 = scmp.eq.s32.totalorder %s21, 0
      %p195 = por %p193, %p194
      %p196 = scmp.le.s32.totalorder 1, %s15
      %p197 = scmp.lt.s32.totalorder %s15, 5
      %p198 = pnand %p196, %p197
      %p199 = pneg %p198
      // Predicated region
      $region9: #{tpu_custom_call.1} parent=5 // pred_check
        _
      $region10: #{tpu_custom_call.1} parent=5 // pred_check_branch
        %201 = sbr.rel (%p198) target = $region12
      $region11: #{tpu_custom_call.1} parent=5 // pred_region
        %s202 = ssub.s32 %s15, 1
        // Predicated region
        $region13: #{tpu_custom_call.1} parent=11 // pred_check
          %p203 = pneg %p76
        $region14: #{tpu_custom_call.1} parent=11 // pred_check_branch
          %205 = sbr.rel (%p203) target = $region16
        $region15: #{tpu_custom_call.1} parent=11 // pred_region
          _
        $region16: #{tpu_custom_call.1} parent=11 // pred_fallthru
          _
        // Predicated region
        $region17: #{tpu_custom_call.1} parent=11 // pred_check
          %p206 = pneg %p97
        $region18: #{tpu_custom_call.1} parent=11 // pred_check_branch
          %208 = sbr.rel (%p206) target = $region20
        $region19: #{tpu_custom_call.1} parent=11 // pred_region
          _
        $region20: #{tpu_custom_call.1} parent=11 // pred_fallthru
          _
        // Predicated region
        $region21: #{tpu_custom_call.1} parent=11 // pred_check
          %p209 = pneg %p118
        $region22: #{tpu_custom_call.1} parent=11 // pred_check_branch
          %211 = sbr.rel (%p209) target = $region24
        $region23: #{tpu_custom_call.1} parent=11 // pred_region
          _
        $region24: #{tpu_custom_call.1} parent=11 // pred_fallthru
          _
        // Predicated region
        $region25: #{tpu_custom_call.1} parent=11 // pred_check
          %p212 = pneg %p139
        $region26: #{tpu_custom_call.1} parent=11 // pred_check_branch
          %214 = sbr.rel (%p212) target = $region28
        $region27: #{tpu_custom_call.1} parent=11 // pred_region
          _
        $region28: #{tpu_custom_call.1} parent=11 // pred_fallthru
          _
        // Predicated region
        $region29: #{tpu_custom_call.1} parent=11 // pred_check
          %p215 = pneg %p160
        $region30: #{tpu_custom_call.1} parent=11 // pred_check_branch
          %217 = sbr.rel (%p215) target = $region32
        $region31: #{tpu_custom_call.1} parent=11 // pred_region
          _
        $region32: #{tpu_custom_call.1} parent=11 // pred_fallthru
          _
      $region12: #{tpu_custom_call.1} parent=5 // pred_fallthru
        _
      %p218 = scmp.lt.s32.totalorder %s15, 4
      // Predicated region
      $region33: #{tpu_custom_call.1} parent=5 // pred_check
        %p219 = pneg %p218
      $region34: #{tpu_custom_call.1} parent=5 // pred_check_branch
        %221 = sbr.rel (%p219) target = $region36
      $region35: #{tpu_custom_call.1} parent=5 // pred_region
        // Predicated region
        $region37: #{tpu_custom_call.1} parent=35 // pred_check
          %p222 = pneg %p49
        $region38: #{tpu_custom_call.1} parent=35 // pred_check_branch
          %224 = sbr.rel (%p222) target = $region40
        $region39: #{tpu_custom_call.1} parent=35 // pred_region
          %s225 = sand.u32 %s39, 1
          %s226 = scalar_lea.sflag [#allocation3], %s225
          %s227 = sand.u32 %s39, 1
          %s228 = smul.addr %s227, 64
          %s229 = scalar_lea.vmem [#allocation2], %s228
          %s230 = smul.u32 16, %s23
          %s232 = ssub.s32 1024, 1024
          %233 = vsyncadd %s226, %s232
          %s234 = smul.addr %s22, 32
          %s235 = sadd.s32 %s230, %s234
          %s236 = smul.addr %s235, 64
          %s237 = scalar_lea.hbm %s0, %s236
          %s238 = sshll.u32 %s229, 4
          %s239 = int_to_ptr.vmem [resolvable:$true] %s238
          %244 = dma.hbm_to_vmem [thread:$0]  %s237, 1024, %s239, %s226, 64, 64, 4
        $region40: #{tpu_custom_call.1} parent=35 // pred_fallthru
          _
      $region36: #{tpu_custom_call.1} parent=5 // pred_fallthru
        _
      %p245 = scmp.le.s32.totalorder 1, %s15
      %p246 = scmp.lt.s32.totalorder %s15, 5
      %p247 = pnand %p245, %p246
      %p248 = pneg %p247
      // Predicated region
      $region41: #{tpu_custom_call.1} parent=5 // pred_check
        _
      $region42: #{tpu_custom_call.1} parent=5 // pred_check_branch
        %250 = sbr.rel (%p247) target = $region44
      $region43: #{tpu_custom_call.1} parent=5 // pred_region
        %s251 = ssub.s32 %s15, 1
        %s252 = sand.u32 %s42, 1
        %s253 = scalar_lea.sflag [#allocation3], %s252
        %s254 = sand.u32 %s42, 1
        %s255 = smul.addr %s254, 64
        %s256 = scalar_lea.vmem [#allocation2], %s255
        // Predicated region
        $region45: #{tpu_custom_call.1} parent=43 // pred_check
          %p257 = pneg %p55
        $region46: #{tpu_custom_call.1} parent=43 // pred_check_branch
          %259 = sbr.rel (%p257) target = $region48
        $region47: #{tpu_custom_call.1} parent=43 // pred_region
          %260 = dma.done %s253, 1024
        $region48: #{tpu_custom_call.1} parent=43 // pred_fallthru
          _
        %s261 = sand.u32 %s42, 1
        %s262 = scalar_lea.sflag [#allocation3], %s261
        %s263 = sand.u32 %s42, 1
        %s264 = smul.addr %s263, 64
        %s265 = scalar_lea.vmem [#allocation2], %s264
        %p266 = pneg %p55
        %p267 = pneg %p52
        %p268 = pneg %p76
        %p269 = pneg %p73
        %p270 = pneg %p97
        %p271 = pneg %p94
        %p272 = pneg %p118
        %p273 = pneg %p115
        %p274 = pneg %p139
        %p275 = pneg %p136
        %p276 = pneg %p160
        %p277 = pneg %p157
        %p278 = pneg %p188
        %p279 = pneg %p185
        %s280 = smul.u32 16, %s25
        %p281 = scmp.lt.s32.totalorder %s24, 1
        %s282 = scalar_select %p281, %s24, 1
        %p283 = scmp.lt.s32.totalorder %s280, 31
        %s284 = scalar_select %p283, %s280, 31
        %s285 = smul.addr %s282, 32
        %s286 = sadd.s32 %s284, %s285
        %s287 = smul.addr %s286, 8
        %s288 = scalar_lea.vmem %s6, %s287
        %s289 = smul.u32 16, %s25
        %s290 = smul.u32 16, %s25
        %p291 = scmp.lt.s32.totalorder %s24, 1
        %s292 = scalar_select %p291, %s24, 1
        %p293 = scmp.lt.s32.totalorder %s290, 31
        %s294 = scalar_select %p293, %s290, 31
        %s295 = smul.addr %s292, 32
        %s296 = sadd.s32 %s294, %s295
        %s297 = smul.addr %s296, 8
        %s298 = scalar_lea.vmem %s6, %s297
        %s299 = smul.u32 16, %s25
        %v301 = vld [vmem:[%s256] sm:$0xf]
        %v302 = vld [vmem:[%s256 + $0x4] sm:$0xf]
        %v303 = vld [vmem:[%s256 + $0x8] sm:$0xf]
        %v304 = vld [vmem:[%s256 + $0xc] sm:$0xf]
        %v305 = vld [vmem:[%s256 + $0x10] sm:$0xf]
        %v306 = vld [vmem:[%s256 + $0x14] sm:$0xf]
        %v307 = vld [vmem:[%s256 + $0x18] sm:$0xf]
        %v308 = vld [vmem:[%s256 + $0x1c] sm:$0xf]
        %v309 = vld [vmem:[%s256 + $0x20] sm:$0xf]
        %v310 = vld [vmem:[%s256 + $0x24] sm:$0xf]
        %v311 = vld [vmem:[%s256 + $0x28] sm:$0xf]
        %v312 = vld [vmem:[%s256 + $0x2c] sm:$0xf]
        %v313 = vld [vmem:[%s256 + $0x30] sm:$0xf]
        %v314 = vld [vmem:[%s256 + $0x34] sm:$0xf]
        %v315 = vld [vmem:[%s256 + $0x38] sm:$0xf]
        %v316 = vld [vmem:[%s256 + $0x3c] sm:$0xf]
        %v317 = vld [vmem:[%s1] sm:$0xff]
        %v318 = vld [vmem:[%s1 + $0x8] sm:$0xff]
        %v319 = vld [vmem:[%s1 + $0x10] sm:$0xff]
        %v320 = vld [vmem:[%s1 + $0x18] sm:$0xff]
        %v321 = vld [vmem:[%s1 + $0x20] sm:$0xff]
        %v322 = vld [vmem:[%s1 + $0x28] sm:$0xff]
        %v323 = vld [vmem:[%s1 + $0x30] sm:$0xff]
        %v324 = vld [vmem:[%s1 + $0x38] sm:$0xff]
        %v325 = vld [vmem:[%s1 + $0x40] sm:$0xff]
        %v326 = vld [vmem:[%s1 + $0x48] sm:$0xff]
        %v327 = vld [vmem:[%s1 + $0x50] sm:$0xff]
        %v328 = vld [vmem:[%s1 + $0x58] sm:$0xff]
        %v329 = vld [vmem:[%s1 + $0x60] sm:$0xff]
        %v330 = vld [vmem:[%s1 + $0x68] sm:$0xff]
        %v331 = vld [vmem:[%s1 + $0x70] sm:$0xff]
        %v332 = vld [vmem:[%s1 + $0x78] sm:$0xff]
        %v349 = vunpack.c.l.b16 %v301
        %v350 = vunpack.c.l.b16 %v302
        %v351 = vunpack.c.l.b16 %v303
        %v352 = vunpack.c.l.b16 %v304
        %v353 = vunpack.c.l.b16 %v305
        %v354 = vunpack.c.l.b16 %v306
        %v355 = vunpack.c.l.b16 %v307
        %v356 = vunpack.c.l.b16 %v308
        %v357 = vunpack.c.l.b16 %v309
        %v358 = vunpack.c.l.b16 %v310
        %v359 = vunpack.c.l.b16 %v311
        %v360 = vunpack.c.l.b16 %v312
        %v361 = vunpack.c.l.b16 %v313
        %v362 = vunpack.c.l.b16 %v314
        %v363 = vunpack.c.l.b16 %v315
        %v364 = vunpack.c.l.b16 %v316
        %v365 = vpack.c.b16 %v350, %v349
        %v366 = vpack.c.b16 %v352, %v351
        %v367 = vpack.c.b16 %v354, %v353
        %v368 = vpack.c.b16 %v356, %v355
        %v369 = vpack.c.b16 %v358, %v357
        %v370 = vpack.c.b16 %v360, %v359
        %v371 = vpack.c.b16 %v362, %v361
        %v372 = vpack.c.b16 %v364, %v363
        %v397 = vunpack.c.l.b16 %v317
        %v398 = vunpack.c.h.b16 %v317
        %v399 = vunpack.c.l.b16 %v318
        %v400 = vunpack.c.h.b16 %v318
        %v401 = vunpack.c.l.b16 %v319
        %v402 = vunpack.c.h.b16 %v319
        %v403 = vunpack.c.l.b16 %v320
        %v404 = vunpack.c.h.b16 %v320
        %v405 = vunpack.c.l.b16 %v321
        %v406 = vunpack.c.h.b16 %v321
        %v407 = vunpack.c.l.b16 %v322
        %v408 = vunpack.c.h.b16 %v322
        %v409 = vunpack.c.l.b16 %v323
        %v410 = vunpack.c.h.b16 %v323
        %v411 = vunpack.c.l.b16 %v324
        %v412 = vunpack.c.h.b16 %v324
        %v413 = vunpack.c.l.b16 %v325
        %v414 = vunpack.c.h.b16 %v325
        %v415 = vunpack.c.l.b16 %v326
        %v416 = vunpack.c.h.b16 %v326
        %v417 = vunpack.c.l.b16 %v327
        %v418 = vunpack.c.h.b16 %v327
        %v419 = vunpack.c.l.b16 %v328
        %v420 = vunpack.c.h.b16 %v328
        %v421 = vunpack.c.l.b16 %v329
        %v422 = vunpack.c.h.b16 %v329
        %v423 = vunpack.c.l.b16 %v330
        %v424 = vunpack.c.h.b16 %v330
        %v425 = vunpack.c.l.b16 %v331
        %v426 = vunpack.c.h.b16 %v331
        %v427 = vunpack.c.l.b16 %v332
        %v428 = vunpack.c.h.b16 %v332
        %v429 = vpack.c.b16 %v399, %v397
        %v430 = vpack.c.b16 %v400, %v398
        %v431 = vpack.c.b16 %v403, %v401
        %v432 = vpack.c.b16 %v404, %v402
        %v433 = vpack.c.b16 %v407, %v405
        %v434 = vpack.c.b16 %v408, %v406
        %v435 = vpack.c.b16 %v411, %v409
        %v436 = vpack.c.b16 %v412, %v410
        %v437 = vpack.c.b16 %v415, %v413
        %v438 = vpack.c.b16 %v416, %v414
        %v439 = vpack.c.b16 %v419, %v417
        %v440 = vpack.c.b16 %v420, %v418
        %v441 = vpack.c.b16 %v423, %v421
        %v442 = vpack.c.b16 %v424, %v422
        %v443 = vpack.c.b16 %v427, %v425
        %v444 = vpack.c.b16 %v428, %v426
        %461 = vmatprep.subr.bf16.mxu0 %v430
        %462 = vmatpush1.bf16.msra.mxu0 %v429
        %463 = vmatprep.subr.bf16.mxu0 %v432
        %464 = vmatpush1.bf16.msra.mxu0 %v431
        %465 = vmatprep.subr.bf16.mxu0 %v434
        %466 = vmatpush1.bf16.msra.mxu0 %v433
        %467 = vmatprep.subr.bf16.mxu0 %v436
        %468 = vmatpush1.bf16.msra.mxu0 %v435
        %469 = vmatprep.subr.bf16.mxu0 %v438
        %470 = vmatpush1.bf16.msra.mxu0 %v437
        %471 = vmatprep.subr.bf16.mxu0 %v440
        %472 = vmatpush1.bf16.msra.mxu0 %v439
        %473 = vmatprep.subr.bf16.mxu0 %v442
        %474 = vmatpush1.bf16.msra.mxu0 %v441
        %475 = vmatprep.subr.bf16.mxu0 %v444
        %476 = vmatpush1.bf16.msra.mxu0 %v443
        %477 = vmatprep.subr.bf16.mxu0 0
        %478 = vmatpush1.bf16.msra.mxu0 0
        %479 = vmatprep.subr.bf16.mxu0 0
        %480 = vmatpush1.bf16.msra.mxu0 0
        %481 = vmatprep.subr.bf16.mxu0 0
        %482 = vmatpush1.bf16.msra.mxu0 0
        %483 = vmatprep.subr.bf16.mxu0 0
        %484 = vmatpush1.bf16.msra.mxu0 0
        %485 = vmatprep.subr.bf16.mxu0 0
        %486 = vmatpush1.bf16.msra.mxu0 0
        %487 = vmatprep.subr.bf16.mxu0 0
        %488 = vmatpush1.bf16.msra.mxu0 0
        %489 = vmatprep.subr.bf16.mxu0 0
        %490 = vmatpush1.bf16.msra.mxu0 0
        %491 = vmatprep.subr.bf16.mxu0 0
        %492 = vmatpush1.bf16.msra.mxu0 0
        %493 = vmatprep.mubr.bf16.mxu0 0
        %494 = vmatmul.mubr.bf16.gmra.mrb[0].mxu0 %v365
        %v495 = vpop.f32.mrb[0].mxu0
        %v496 = vadd.f32 0.0, %v495
        %v497 = vpop.f32.mrb[0].mxu0
        %v498 = vadd.f32 0.0, %v497
        %v499 = vpop.f32.mrb[0].mxu0
        %v500 = vadd.f32 0.0, %v499
        %v501 = vpop.f32.mrb[0].mxu0
        %v502 = vadd.f32 0.0, %v501
        %503 = vmatprep.mubr.bf16.mxu0 0
        %504 = vmatmul.mubr.bf16.gmra.mrb[0].mxu0 %v366
        %v505 = vpop.f32.mrb[0].mxu0
        %v506 = vadd.f32 0.0, %v505
        %v507 = vpop.f32.mrb[0].mxu0
        %v508 = vadd.f32 0.0, %v507
        %v509 = vpop.f32.mrb[0].mxu0
        %v510 = vadd.f32 0.0, %v509
        %v511 = vpop.f32.mrb[0].mxu0
        %v512 = vadd.f32 0.0, %v511
        %513 = vmatprep.mubr.bf16.mxu0 0
        %514 = vmatmul.mubr.bf16.gmra.mrb[0].mxu0 %v367
        %v515 = vpop.f32.mrb[0].mxu0
        %v516 = vadd.f32 0.0, %v515
        %v517 = vpop.f32.mrb[0].mxu0
        %v518 = vadd.f32 0.0, %v517
        %v519 = vpop.f32.mrb[0].mxu0
        %v520 = vadd.f32 0.0, %v519
        %v521 = vpop.f32.mrb[0].mxu0
        %v522 = vadd.f32 0.0, %v521
        %523 = vmatprep.mubr.bf16.mxu0 0
        %524 = vmatmul.mubr.bf16.gmra.mrb[0].mxu0 %v368
        %v525 = vpop.f32.mrb[0].mxu0
        %v526 = vadd.f32 0.0, %v525
        %v527 = vpop.f32.mrb[0].mxu0
        %v528 = vadd.f32 0.0, %v527
        %v529 = vpop.f32.mrb[0].mxu0
        %v530 = vadd.f32 0.0, %v529
        %v531 = vpop.f32.mrb[0].mxu0
        %v532 = vadd.f32 0.0, %v531
        %533 = vmatprep.mubr.bf16.mxu0 0
        %534 = vmatmul.mubr.bf16.gmra.mrb[0].mxu0 %v369
        %v535 = vpop.f32.mrb[0].mxu0
        %v536 = vadd.f32 0.0, %v535
        %v537 = vpop.f32.mrb[0].mxu0
        %v538 = vadd.f32 0.0, %v537
        %v539 = vpop.f32.mrb[0].mxu0
        %v540 = vadd.f32 0.0, %v539
        %v541 = vpop.f32.mrb[0].mxu0
        %v542 = vadd.f32 0.0, %v541
        %543 = vmatprep.mubr.bf16.mxu0 0
        %544 = vmatmul.mubr.bf16.gmra.mrb[0].mxu0 %v370
        %v545 = vpop.f32.mrb[0].mxu0
        %v546 = vadd.f32 0.0, %v545
        %v547 = vpop.f32.mrb[0].mxu0
        %v548 = vadd.f32 0.0, %v547
        %v549 = vpop.f32.mrb[0].mxu0
        %v550 = vadd.f32 0.0, %v549
        %v551 = vpop.f32.mrb[0].mxu0
        %v552 = vadd.f32 0.0, %v551
        %553 = vmatprep.mubr.bf16.mxu0 0
        %554 = vmatmul.mubr.bf16.gmra.mrb[0].mxu0 %v371
        %v555 = vpop.f32.mrb[0].mxu0
        %v556 = vadd.f32 0.0, %v555
        %v557 = vpop.f32.mrb[0].mxu0
        %v558 = vadd.f32 0.0, %v557
        %v559 = vpop.f32.mrb[0].mxu0
        %v560 = vadd.f32 0.0, %v559
        %v561 = vpop.f32.mrb[0].mxu0
        %v562 = vadd.f32 0.0, %v561
        %563 = vmatprep.mubr.bf16.mxu0 0
        %564 = vmatmul.mubr.bf16.gmra.mrb[0].mxu0 %v372
        %v565 = vpop.f32.mrb[0].mxu0
        %v566 = vadd.f32 0.0, %v565
        %v567 = vpop.f32.mrb[0].mxu0
        %v568 = vadd.f32 0.0, %v567
        %v569 = vpop.f32.mrb[0].mxu0
        %v570 = vadd.f32 0.0, %v569
        %v571 = vpop.f32.mrb[0].mxu0
        %v572 = vadd.f32 0.0, %v571
        %573 = vdwg.mxu0
        %v574 = vld [vmem:[%s2] sm:$0x3]
        %v576 = vlaneseq
        %v577 = vshrl.u32 %v576, 7
        %v578 = vsub.s32 0, %v577
        %v579 = vrot.slane %v574, %v578
        %v580 = vlaneseq
        %v581 = vshrl.u32 %v580, 7
        %v582 = vsub.s32 1, %v581
        %v583 = vrot.slane %v574, %v582
        %v586 = vmul.f32 %v496, %v579
        %v587 = vmul.f32 %v498, %v583
        %v588 = vmul.f32 %v500, %v579
        %v589 = vmul.f32 %v502, %v583
        %v590 = vmul.f32 %v506, %v579
        %v591 = vmul.f32 %v508, %v583
        %v592 = vmul.f32 %v510, %v579
        %v593 = vmul.f32 %v512, %v583
        %v594 = vmul.f32 %v516, %v579
        %v595 = vmul.f32 %v518, %v583
        %v596 = vmul.f32 %v520, %v579
        %v597 = vmul.f32 %v522, %v583
        %v598 = vmul.f32 %v526, %v579
        %v599 = vmul.f32 %v528, %v583
        %v600 = vmul.f32 %v530, %v579
        %v601 = vmul.f32 %v532, %v583
        %v602 = vmul.f32 %v536, %v579
        %v603 = vmul.f32 %v538, %v583
        %v604 = vmul.f32 %v540, %v579
        %v605 = vmul.f32 %v542, %v583
        %v606 = vmul.f32 %v546, %v579
        %v607 = vmul.f32 %v548, %v583
        %v608 = vmul.f32 %v550, %v579
        %v609 = vmul.f32 %v552, %v583
        %v610 = vmul.f32 %v556, %v579
        %v611 = vmul.f32 %v558, %v583
        %v612 = vmul.f32 %v560, %v579
        %v613 = vmul.f32 %v562, %v583
        %v614 = vmul.f32 %v566, %v579
        %v615 = vmul.f32 %v568, %v583
        %v616 = vmul.f32 %v570, %v579
        %v617 = vmul.f32 %v572, %v583
        %v618 = vld [vmem:[%s3] sm:$0x3]
        %v620 = vlaneseq
        %v621 = vshrl.u32 %v620, 7
        %v622 = vsub.s32 0, %v621
        %v623 = vrot.slane %v618, %v622
        %v624 = vlaneseq
        %v625 = vshrl.u32 %v624, 7
        %v626 = vsub.s32 1, %v625
        %v627 = vrot.slane %v618, %v626
        %v630 = vadd.f32 %v586, %v623
        %v631 = vadd.f32 %v587, %v627
        %v632 = vadd.f32 %v588, %v623
        %v633 = vadd.f32 %v589, %v627
        %v634 = vadd.f32 %v590, %v623
        %v635 = vadd.f32 %v591, %v627
        %v636 = vadd.f32 %v592, %v623
        %v637 = vadd.f32 %v593, %v627
        %v638 = vadd.f32 %v594, %v623
        %v639 = vadd.f32 %v595, %v627
        %v640 = vadd.f32 %v596, %v623
        %v641 = vadd.f32 %v597, %v627
        %v642 = vadd.f32 %v598, %v623
        %v643 = vadd.f32 %v599, %v627
        %v644 = vadd.f32 %v600, %v623
        %v645 = vadd.f32 %v601, %v627
        %v646 = vadd.f32 %v602, %v623
        %v647 = vadd.f32 %v603, %v627
        %v648 = vadd.f32 %v604, %v623
        %v649 = vadd.f32 %v605, %v627
        %v650 = vadd.f32 %v606, %v623
        %v651 = vadd.f32 %v607, %v627
        %v652 = vadd.f32 %v608, %v623
        %v653 = vadd.f32 %v609, %v627
        %v654 = vadd.f32 %v610, %v623
        %v655 = vadd.f32 %v611, %v627
        %v656 = vadd.f32 %v612, %v623
        %v657 = vadd.f32 %v613, %v627
        %v658 = vadd.f32 %v614, %v623
        %v659 = vadd.f32 %v615, %v627
        %v660 = vadd.f32 %v616, %v623
        %v661 = vadd.f32 %v617, %v627
        %v662 = vmax.f32 %v630, 0.0
        %v663 = vmax.f32 %v631, 0.0
        %v664 = vmax.f32 %v632, 0.0
        %v665 = vmax.f32 %v633, 0.0
        %v666 = vmax.f32 %v634, 0.0
        %v667 = vmax.f32 %v635, 0.0
        %v668 = vmax.f32 %v636, 0.0
        %v669 = vmax.f32 %v637, 0.0
        %v670 = vmax.f32 %v638, 0.0
        %v671 = vmax.f32 %v639, 0.0
        %v672 = vmax.f32 %v640, 0.0
        %v673 = vmax.f32 %v641, 0.0
        %v674 = vmax.f32 %v642, 0.0
        %v675 = vmax.f32 %v643, 0.0
        %v676 = vmax.f32 %v644, 0.0
        %v677 = vmax.f32 %v645, 0.0
        %v678 = vmax.f32 %v646, 0.0
        %v679 = vmax.f32 %v647, 0.0
        %v680 = vmax.f32 %v648, 0.0
        %v681 = vmax.f32 %v649, 0.0
        %v682 = vmax.f32 %v650, 0.0
        %v683 = vmax.f32 %v651, 0.0
        %v684 = vmax.f32 %v652, 0.0
        %v685 = vmax.f32 %v653, 0.0
        %v686 = vmax.f32 %v654, 0.0
        %v687 = vmax.f32 %v655, 0.0
        %v688 = vmax.f32 %v656, 0.0
        %v689 = vmax.f32 %v657, 0.0
        %v690 = vmax.f32 %v658, 0.0
        %v691 = vmax.f32 %v659, 0.0
        %v692 = vmax.f32 %v660, 0.0
        %v693 = vmax.f32 %v661, 0.0
        %v694 = vpack.c.bf16 %v664, %v662
        %v695 = vpack.c.bf16 %v665, %v663
        %v696 = vpack.c.bf16 %v668, %v666
        %v697 = vpack.c.bf16 %v669, %v667
        %v698 = vpack.c.bf16 %v672, %v670
        %v699 = vpack.c.bf16 %v673, %v671
        %v700 = vpack.c.bf16 %v676, %v674
        %v701 = vpack.c.bf16 %v677, %v675
        %v702 = vpack.c.bf16 %v680, %v678
        %v703 = vpack.c.bf16 %v681, %v679
        %v704 = vpack.c.bf16 %v684, %v682
        %v705 = vpack.c.bf16 %v685, %v683
        %v706 = vpack.c.bf16 %v688, %v686
        %v707 = vpack.c.bf16 %v689, %v687
        %v708 = vpack.c.bf16 %v692, %v690
        %v709 = vpack.c.bf16 %v693, %v691
        %v710 = vld [vmem:[%s4] sm:$0xf]
        %v711 = vld [vmem:[%s4 + $0x4] sm:$0xf]
        %v712 = vld [vmem:[%s4 + $0x8] sm:$0xf]
        %v713 = vld [vmem:[%s4 + $0xc] sm:$0xf]
        %v714 = vld [vmem:[%s4 + $0x10] sm:$0xf]
        %v715 = vld [vmem:[%s4 + $0x14] sm:$0xf]
        %v716 = vld [vmem:[%s4 + $0x18] sm:$0xf]
        %v717 = vld [vmem:[%s4 + $0x1c] sm:$0xf]
        %v718 = vld [vmem:[%s4 + $0x20] sm:$0xf]
        %v719 = vld [vmem:[%s4 + $0x24] sm:$0xf]
        %v720 = vld [vmem:[%s4 + $0x28] sm:$0xf]
        %v721 = vld [vmem:[%s4 + $0x2c] sm:$0xf]
        %v722 = vld [vmem:[%s4 + $0x30] sm:$0xf]
        %v723 = vld [vmem:[%s4 + $0x34] sm:$0xf]
        %v724 = vld [vmem:[%s4 + $0x38] sm:$0xf]
        %v725 = vld [vmem:[%s4 + $0x3c] sm:$0xf]
        %v726 = vld [vmem:[%s4 + $0x40] sm:$0xf]
        %v727 = vld [vmem:[%s4 + $0x44] sm:$0xf]
        %v728 = vld [vmem:[%s4 + $0x48] sm:$0xf]
        %v729 = vld [vmem:[%s4 + $0x4c] sm:$0xf]
        %v730 = vld [vmem:[%s4 + $0x50] sm:$0xf]
        %v731 = vld [vmem:[%s4 + $0x54] sm:$0xf]
        %v732 = vld [vmem:[%s4 + $0x58] sm:$0xf]
        %v733 = vld [vmem:[%s4 + $0x5c] sm:$0xf]
        %v734 = vld [vmem:[%s4 + $0x60] sm:$0xf]
        %v735 = vld [vmem:[%s4 + $0x64] sm:$0xf]
        %v736 = vld [vmem:[%s4 + $0x68] sm:$0xf]
        %v737 = vld [vmem:[%s4 + $0x6c] sm:$0xf]
        %v738 = vld [vmem:[%s4 + $0x70] sm:$0xf]
        %v739 = vld [vmem:[%s4 + $0x74] sm:$0xf]
        %v740 = vld [vmem:[%s4 + $0x78] sm:$0xf]
        %v741 = vld [vmem:[%s4 + $0x7c] sm:$0xf]
        %v742 = vld [vmem:[%s5] sm:$0x1]
        %v744 = vlaneseq
        %v745 = vshrl.u32 %v744, 7
        %v746 = vsub.s32 0, %v745
        %v747 = vrot.slane %v742, %v746
        %v781 = vunpack.c.l.b16 %v710
        %v782 = vunpack.c.l.b16 %v711
        %v783 = vunpack.c.l.b16 %v712
        %v784 = vunpack.c.l.b16 %v713
        %v785 = vunpack.c.l.b16 %v714
        %v786 = vunpack.c.l.b16 %v715
        %v787 = vunpack.c.l.b16 %v716
        %v788 = vunpack.c.l.b16 %v717
        %v789 = vunpack.c.l.b16 %v718
        %v790 = vunpack.c.l.b16 %v719
        %v791 = vunpack.c.l.b16 %v720
        %v792 = vunpack.c.l.b16 %v721
        %v793 = vunpack.c.l.b16 %v722
        %v794 = vunpack.c.l.b16 %v723
        %v795 = vunpack.c.l.b16 %v724
        %v796 = vunpack.c.l.b16 %v725
        %v797 = vunpack.c.l.b16 %v726
        %v798 = vunpack.c.l.b16 %v727
        %v799 = vunpack.c.l.b16 %v728
        %v800 = vunpack.c.l.b16 %v729
        %v801 = vunpack.c.l.b16 %v730
        %v802 = vunpack.c.l.b16 %v731
        %v803 = vunpack.c.l.b16 %v732
        %v804 = vunpack.c.l.b16 %v733
        %v805 = vunpack.c.l.b16 %v734
        %v806 = vunpack.c.l.b16 %v735
        %v807 = vunpack.c.l.b16 %v736
        %v808 = vunpack.c.l.b16 %v737
        %v809 = vunpack.c.l.b16 %v738
        %v810 = vunpack.c.l.b16 %v739
        %v811 = vunpack.c.l.b16 %v740
        %v812 = vunpack.c.l.b16 %v741
        %v813 = vpack.c.b16 %v782, %v781
        %v814 = vpack.c.b16 %v784, %v783
        %v815 = vpack.c.b16 %v786, %v785
        %v816 = vpack.c.b16 %v788, %v787
        %v817 = vpack.c.b16 %v790, %v789
        %v818 = vpack.c.b16 %v792, %v791
        %v819 = vpack.c.b16 %v794, %v793
        %v820 = vpack.c.b16 %v796, %v795
        %v821 = vpack.c.b16 %v798, %v797
        %v822 = vpack.c.b16 %v800, %v799
        %v823 = vpack.c.b16 %v802, %v801
        %v824 = vpack.c.b16 %v804, %v803
        %v825 = vpack.c.b16 %v806, %v805
        %v826 = vpack.c.b16 %v808, %v807
        %v827 = vpack.c.b16 %v810, %v809
        %v828 = vpack.c.b16 %v812, %v811
        %845 = vmatprep.subr.bf16.mxu0 0
        %846 = vmatpush1.bf16.msra.mxu0 %v813
        %847 = vmatprep.subr.bf16.mxu0 0
        %848 = vmatpush1.bf16.msra.mxu0 %v814
        %849 = vmatprep.subr.bf16.mxu0 0
        %850 = vmatpush1.bf16.msra.mxu0 %v815
        %851 = vmatprep.subr.bf16.mxu0 0
        %852 = vmatpush1.bf16.msra.mxu0 %v816
        %853 = vmatprep.subr.bf16.mxu0 0
        %854 = vmatpush1.bf16.msra.mxu0 %v817
        %855 = vmatprep.subr.bf16.mxu0 0
        %856 = vmatpush1.bf16.msra.mxu0 %v818
        %857 = vmatprep.subr.bf16.mxu0 0
        %858 = vmatpush1.bf16.msra.mxu0 %v819
        %859 = vmatprep.subr.bf16.mxu0 0
        %860 = vmatpush1.bf16.msra.mxu0 %v820
        %861 = vmatprep.subr.bf16.mxu0 0
        %862 = vmatpush1.bf16.msra.mxu0 %v821
        %863 = vmatprep.subr.bf16.mxu0 0
        %864 = vmatpush1.bf16.msra.mxu0 %v822
        %865 = vmatprep.subr.bf16.mxu0 0
        %866 = vmatpush1.bf16.msra.mxu0 %v823
        %867 = vmatprep.subr.bf16.mxu0 0
        %868 = vmatpush1.bf16.msra.mxu0 %v824
        %869 = vmatprep.subr.bf16.mxu0 0
        %870 = vmatpush1.bf16.msra.mxu0 %v825
        %871 = vmatprep.subr.bf16.mxu0 0
        %872 = vmatpush1.bf16.msra.mxu0 %v826
        %873 = vmatprep.subr.bf16.mxu0 0
        %874 = vmatpush1.bf16.msra.mxu0 %v827
        %875 = vmatprep.subr.bf16.mxu0 0
        %876 = vmatpush1.bf16.msra.mxu0 %v828
        %877 = vmatprep.mubr.bf16.mxu0 %v695
        %878 = vmatmul.mubr.bf16.gmra.mrb[0].mxu0 %v694
        %v879 = vpop.f32.mrb[0].mxu0
        %v880 = vadd.f32 %v747, %v879
        %v881 = vpop.f32.mrb[0].mxu0
        %v882 = vpop.f32.mrb[0].mxu0
        %v883 = vadd.f32 %v747, %v882
        %v884 = vpop.f32.mrb[0].mxu0
        %885 = vmatprep.mubr.bf16.mxu0 %v697
        %886 = vmatmul.mubr.bf16.gmra.mrb[0].mxu0 %v696
        %v887 = vpop.f32.mrb[0].mxu0
        %v888 = vadd.f32 %v747, %v887
        %v889 = vpop.f32.mrb[0].mxu0
        %v890 = vpop.f32.mrb[0].mxu0
        %v891 = vadd.f32 %v747, %v890
        %v892 = vpop.f32.mrb[0].mxu0
        %893 = vmatprep.mubr.bf16.mxu0 %v699
        %894 = vmatmul.mubr.bf16.gmra.mrb[0].mxu0 %v698
        %v895 = vpop.f32.mrb[0].mxu0
        %v896 = vadd.f32 %v747, %v895
        %v897 = vpop.f32.mrb[0].mxu0
        %v898 = vpop.f32.mrb[0].mxu0
        %v899 = vadd.f32 %v747, %v898
        %v900 = vpop.f32.mrb[0].mxu0
        %901 = vmatprep.mubr.bf16.mxu0 %v701
        %902 = vmatmul.mubr.bf16.gmra.mrb[0].mxu0 %v700
        %v903 = vpop.f32.mrb[0].mxu0
        %v904 = vadd.f32 %v747, %v903
        %v905 = vpop.f32.mrb[0].mxu0
        %v906 = vpop.f32.mrb[0].mxu0
        %v907 = vadd.f32 %v747, %v906
        %v908 = vpop.f32.mrb[0].mxu0
        %909 = vmatprep.mubr.bf16.mxu0 %v703
        %910 = vmatmul.mubr.bf16.gmra.mrb[0].mxu0 %v702
        %v911 = vpop.f32.mrb[0].mxu0
        %v912 = vadd.f32 %v747, %v911
        %v913 = vpop.f32.mrb[0].mxu0
        %v914 = vpop.f32.mrb[0].mxu0
        %v915 = vadd.f32 %v747, %v914
        %v916 = vpop.f32.mrb[0].mxu0
        %917 = vmatprep.mubr.bf16.mxu0 %v705
        %918 = vmatmul.mubr.bf16.gmra.mrb[0].mxu0 %v704
        %v919 = vpop.f32.mrb[0].mxu0
        %v920 = vadd.f32 %v747, %v919
        %v921 = vpop.f32.mrb[0].mxu0
        %v922 = vpop.f32.mrb[0].mxu0
        %v923 = vadd.f32 %v747, %v922
        %v924 = vpop.f32.mrb[0].mxu0
        %925 = vmatprep.mubr.bf16.mxu0 %v707
        %926 = vmatmul.mubr.bf16.gmra.mrb[0].mxu0 %v706
        %v927 = vpop.f32.mrb[0].mxu0
        %v928 = vadd.f32 %v747, %v927
        %v929 = vpop.f32.mrb[0].mxu0
        %v930 = vpop.f32.mrb[0].mxu0
        %v931 = vadd.f32 %v747, %v930
        %v932 = vpop.f32.mrb[0].mxu0
        %933 = vmatprep.mubr.bf16.mxu0 %v709
        %934 = vmatmul.mubr.bf16.gmra.mrb[0].mxu0 %v708
        %v935 = vpop.f32.mrb[0].mxu0
        %v936 = vadd.f32 %v747, %v935
        %v937 = vpop.f32.mrb[0].mxu0
        %v938 = vpop.f32.mrb[0].mxu0
        %v939 = vadd.f32 %v747, %v938
        %v940 = vpop.f32.mrb[0].mxu0
        %941 = vdwg.mxu0
        %vm942 = vcmask 64512
        %943 = vst.msk [vmem:[%s298] sm:$0xff] %vm942, %v880
        %944 = vst.msk [vmem:[%s298 + $0x8] sm:$0xff] %vm942, %v883
        %945 = vst.msk [vmem:[%s298 + $0x10] sm:$0xff] %vm942, %v888
        %946 = vst.msk [vmem:[%s298 + $0x18] sm:$0xff] %vm942, %v891
        %947 = vst.msk [vmem:[%s298 + $0x20] sm:$0xff] %vm942, %v896
        %948 = vst.msk [vmem:[%s298 + $0x28] sm:$0xff] %vm942, %v899
        %949 = vst.msk [vmem:[%s298 + $0x30] sm:$0xff] %vm942, %v904
        %950 = vst.msk [vmem:[%s298 + $0x38] sm:$0xff] %vm942, %v907
        %951 = vst.msk [vmem:[%s298 + $0x40] sm:$0xff] %vm942, %v912
        %952 = vst.msk [vmem:[%s298 + $0x48] sm:$0xff] %vm942, %v915
        %953 = vst.msk [vmem:[%s298 + $0x50] sm:$0xff] %vm942, %v920
        %954 = vst.msk [vmem:[%s298 + $0x58] sm:$0xff] %vm942, %v923
        %955 = vst.msk [vmem:[%s298 + $0x60] sm:$0xff] %vm942, %v928
        %956 = vst.msk [vmem:[%s298 + $0x68] sm:$0xff] %vm942, %v931
        %957 = vst.msk [vmem:[%s298 + $0x70] sm:$0xff] %vm942, %v936
        %958 = vst.msk [vmem:[%s298 + $0x78] sm:$0xff] %vm942, %v939
        %s959 = smul.u32 16, %s25
        %p960 = scmp.lt.s32.totalorder %s24, 1
        %s961 = scalar_select %p960, %s24, 1
        %p962 = scmp.lt.s32.totalorder %s959, 31
        %s963 = scalar_select %p962, %s959, 31
        %s964 = smul.addr %s961, 32
        %s965 = sadd.s32 %s963, %s964
        %s966 = smul.addr %s965, 8
        %s967 = scalar_lea.vmem %s6, %s966
        // Predicated region
        $region49: #{tpu_custom_call.1} parent=43 // pred_check
          %p968 = pneg %p185
        $region50: #{tpu_custom_call.1} parent=43 // pred_check_branch
          %970 = sbr.rel (%p968) target = $region52
        $region51: #{tpu_custom_call.1} parent=43 // pred_region
          %s971 = smul.u32 16, %s25
        $region52: #{tpu_custom_call.1} parent=43 // pred_fallthru
          _
      $region44: #{tpu_custom_call.1} parent=5 // pred_fallthru
        _
      %p972 = scmp.le.s32.totalorder 2, %s15
      // Predicated region
      $region53: #{tpu_custom_call.1} parent=5 // pred_check
        %p973 = pneg %p972
      $region54: #{tpu_custom_call.1} parent=5 // pred_check_branch
        %975 = sbr.rel (%p973) target = $region56
      $region55: #{tpu_custom_call.1} parent=5 // pred_region
        %s976 = ssub.s32 %s15, 2
        // Predicated region
        $region57: #{tpu_custom_call.1} parent=55 // pred_check
          %p977 = pneg %p191
        $region58: #{tpu_custom_call.1} parent=55 // pred_check_branch
          %979 = sbr.rel (%p977) target = $region60
        $region59: #{tpu_custom_call.1} parent=55 // pred_region
          %s980 = smul.u32 16, %s27
          %p981 = scmp.lt.s32.totalorder %s26, 1
          %s982 = scalar_select %p981, %s26, 1
          %p983 = scmp.lt.s32.totalorder %s980, 31
          %s984 = scalar_select %p983, %s980, 31
          %s985 = smul.addr %s982, 32
          %s986 = sadd.s32 %s984, %s985
          %s987 = smul.addr %s986, 8
          %s988 = scalar_lea.vmem %s6, %s987
        $region60: #{tpu_custom_call.1} parent=55 // pred_fallthru
          _
      $region56: #{tpu_custom_call.1} parent=5 // pred_fallthru
        _
    $region6: #{tpu_custom_call.1} parent=1 // loop_footer
      %s19 = sadd.s32 1, %s15
    $region7: #{tpu_custom_call.1} parent=1 // loop_footer_branch
      %14 = sbr.rel target = $region3
    $region8: #{tpu_custom_call.1} parent=1 // loop_exit
      _
    %989 = vsyncpa [#allocation3], 1
    %s990 = scalar_lea.sflag [#allocation3], 1
    %991 = vsyncpa %s990, 1

</llo_original>
